<compile_context>
chip_gen: v5e
topology: v5e:2x2
jax: 0.10.0
libtpu: 0.0.40
codegen_flags: <defaults>
</compile_context>

<pallas_src>
import jax
import jax.numpy as jnp
from jax import lax
from jax.experimental import pallas as pl
from jax.experimental.pallas import tpu as pltpu

_LANE = 128


def _link_pred_kernel(idx_a_ref, idx_b_ref, u_ref, v_ref, o_ref):
    ia = idx_a_ref[...]                      # (tr, 128) int32, lane-major edges
    ib = idx_b_ref[...]                      # (tr, 128) int32
    n_nodes = u_ref.shape[0]

    gu = jnp.zeros(ia.shape, jnp.float32)
    gv = jnp.zeros(ib.shape, jnp.float32)

    # Exact gather of the per-node scalars u[idx_a], v[idx_b]:
    # select-accumulate against the SMEM tables (no one-hot materialized,
    # no MXU, stays in vregs).
    if n_nodes <= 128:
        for n in range(n_nodes):             # fully unrolled at trace time
            gu = gu + jnp.where(ia == n, u_ref[n], 0.0)
            gv = gv + jnp.where(ib == n, v_ref[n], 0.0)
    else:
        def body(n, carry):
            acc_u, acc_v = carry
            acc_u = acc_u + jnp.where(ia == n, u_ref[n], 0.0)
            acc_v = acc_v + jnp.where(ib == n, v_ref[n], 0.0)
            return acc_u, acc_v
        gu, gv = lax.fori_loop(0, n_nodes, body, (gu, gv))

    s = gu + gv                              # biases already folded into u
    p = 1.0 / (1.0 + jnp.exp(-s))            # sigmoid (EUP exp + divide)
    o_ref[...] = jnp.clip(p, 1e-08, 1.0 - 1e-08)


def link_prediction_forward(inputs, pos_edge_index, neg_edge_index, params,
                            *, tile_e=1024):
    """Mirrors LinkPredictionOutputModule.forward.

    inputs:          [N, D] float32 node embeddings
    pos_edge_index:  [2, E_pos] int32
    neg_edge_index:  [2, E_neg] int32
    params: dict with
      wa [D, D], ba [D]      (linear_a: y = x @ wa^T + ba)
      wo [1, 2D], bo [1]     (linear:   y = x @ wo^T + bo)
    returns: [E_pos + E_neg, 1] float32 in [1e-8, 1 - 1e-8]
    """
    N, D = inputs.shape

    # --- glue: concat the (tiny, int32) edge lists; lane-major 2-D layout ---
    total_edge_index = jnp.concatenate([pos_edge_index, neg_edge_index],
                                       axis=-1)
    E = total_edge_index.shape[1]

    tr = max(1, int(tile_e) // _LANE)             # tile rows of 128 edges each
    rows = -(-E // _LANE)                         # cdiv(E, 128)
    tr = min(tr, rows)
    rows_pad = -(-rows // tr) * tr
    E_pad = rows_pad * _LANE

    idx_a = total_edge_index[0].astype(jnp.int32)
    idx_b = total_edge_index[1].astype(jnp.int32)
    if E_pad != E:
        pad = E_pad - E
        idx_a = jnp.pad(idx_a, (0, pad))          # padded lanes score garbage; sliced off
        idx_b = jnp.pad(idx_b, (0, pad))
    idx_a = idx_a.reshape(rows_pad, _LANE)
    idx_b = idx_b.reshape(rows_pad, _LANE)

    # --- glue / param prep: fold linear_a + head into per-node scalars ---
    #   ha@w1 + hb@w2 + bo == inputs[a]@(Wa^T w1) + inputs[b]@(Wa^T w2)
    #                         + (ba.w1 + ba.w2 + bo)
    w1 = params["wo"][0, :D]                      # (D,)
    w2 = params["wo"][0, D:]                      # (D,)
    va = params["wa"].T @ w1                      # (D,)
    vb = params["wa"].T @ w2                      # (D,)
    c = (jnp.dot(params["ba"], w1) + jnp.dot(params["ba"], w2)
         + params["bo"][0])
    u = (inputs @ va + c).astype(jnp.float32)     # (N,) SMEM table (bias folded in)
    v = (inputs @ vb).astype(jnp.float32)         # (N,) SMEM table

    grid = (rows_pad // tr,)
    out = pl.pallas_call(
        _link_pred_kernel,
        out_shape=jax.ShapeDtypeStruct((rows_pad, _LANE), jnp.float32),
        grid_spec=pltpu.PrefetchScalarGridSpec(
            num_scalar_prefetch=0,
            grid=grid,
            in_specs=[
                pl.BlockSpec((tr, _LANE), lambda i: (i, 0)),          # idx_a tile
                pl.BlockSpec((tr, _LANE), lambda i: (i, 0)),          # idx_b tile
                pl.BlockSpec(memory_space=pltpu.MemorySpace.SMEM),    # u table
                pl.BlockSpec(memory_space=pltpu.MemorySpace.SMEM),    # v table
            ],
            out_specs=pl.BlockSpec((tr, _LANE), lambda i: (i, 0)),
        ),
        compiler_params=pltpu.CompilerParams(
            dimension_semantics=("parallel",),
            vmem_limit_bytes=32 * 1024 * 1024),
    )(idx_a, idx_b, u, v)

    return out.reshape(E_pad)[:E].reshape(E, 1)


def _init_params(key, node_embedding_dim):
    D = node_embedding_dim
    k1, k2, k3, k4 = jax.random.split(key, 4)
    bound_a = 1.0 / jnp.sqrt(D)
    bound_o = 1.0 / jnp.sqrt(2.0 * D)
    return {
        "wa": jax.random.uniform(k1, (D, D), jnp.float32, -bound_a, bound_a),
        "ba": jax.random.uniform(k2, (D,), jnp.float32, -bound_a, bound_a),
        "wo": jax.random.uniform(k3, (1, 2 * D), jnp.float32, -bound_o,
                                 bound_o),
        "bo": jax.random.uniform(k4, (1,), jnp.float32, -bound_o, bound_o),
    }


def _reference(inputs, pos_edge_index, neg_edge_index, params):
    # Pure-JAX reference (mirrors the PyTorch forward) for a sanity check.
    tei = jnp.concatenate([pos_edge_index, neg_edge_index], axis=-1)
    na = jnp.take(inputs, tei[0], axis=0) @ params["wa"].T + params["ba"]
    nb = jnp.take(inputs, tei[1], axis=0) @ params["wa"].T + params["ba"]
    x = jnp.concatenate([na, nb], axis=1) @ params["wo"].T + params["bo"]
    return jnp.clip(jax.nn.sigmoid(x), 1e-08, 1.0 - 1e-08)


def _run_case(key, N, D, E_pos, E_neg, tile_e=1024):
    k_feat, k_pos, k_neg, k_par = jax.random.split(key, 4)
    inputs = jax.random.normal(k_feat, (N, D), jnp.float32)
    pos_edge_index = jax.random.randint(k_pos, (2, E_pos), 0, N, jnp.int32)
    neg_edge_index = jax.random.randint(k_neg, (2, E_neg), 0, N, jnp.int32)
    params = _init_params(k_par, D)

    out = link_prediction_forward(inputs, pos_edge_index, neg_edge_index,
                                  params, tile_e=tile_e)
    out = jax.block_until_ready(out)

    ref = _reference(inputs, pos_edge_index, neg_edge_index, params)
    assert out.shape == (E_pos + E_neg, 1), out.shape
    assert jnp.max(jnp.abs(out - ref)) < 1e-5, float(jnp.max(jnp.abs(out - ref)))


if __name__ == "__main__":
    key = jax.random.PRNGKey(0)
    k1, k2 = jax.random.split(key, 2)

    # Case 1: small, odd edge count -> exercises padding + unrolled gather path.
    _run_case(k1, N=16, D=32, E_pos=9, E_neg=8)

    # Case 2: larger N (> 128 -> fori_loop gather) and multi-tile grid.
    _run_case(k2, N=300, D=32, E_pos=1300, E_neg=1200)

    print("KERNEL_OK")
</pallas_src>

<mosaic_0001>
module attributes {stable_mosaic.version = 11 : i64} {
  func.func @_link_pred_kernel(%arg0: i32, %arg1: memref<1x128xi32, #tpu.memory_space<vmem>>, %arg2: memref<1x128xi32, #tpu.memory_space<vmem>>, %arg3: memref<16xf32, #tpu.memory_space<smem>>, %arg4: memref<16xf32, #tpu.memory_space<smem>>, %arg5: memref<1x128xf32, #tpu.memory_space<vmem>>) attributes {dimension_semantics = [#tpu.dimension_semantics<parallel>], iteration_bounds = array<i64: 1>, scalar_prefetch = 0 : i64, scratch_operands = 0 : i64, tpu.core_type = #tpu.core_type<tc>, window_params = [{transform_indices = @transform_0, window_bounds = array<i64: 1, 128>}, {transform_indices = @transform_1, window_bounds = array<i64: 1, 128>}, {transform_indices = @transform_2, window_bounds = array<i64: 16>}, {transform_indices = @transform_3, window_bounds = array<i64: 16>}, {transform_indices = @transform_4, window_bounds = array<i64: 1, 128>}]} {
    %c0 = arith.constant 0 : index
    %c0_0 = arith.constant 0 : index
    %0 = vector.load %arg1[%c0, %c0_0] : memref<1x128xi32, #tpu.memory_space<vmem>>, vector<1x128xi32>
    %c0_1 = arith.constant 0 : index
    %c0_2 = arith.constant 0 : index
    %1 = vector.load %arg2[%c0_1, %c0_2] : memref<1x128xi32, #tpu.memory_space<vmem>>, vector<1x128xi32>
    %cst = arith.constant 0.000000e+00 : f32
    %2 = vector.broadcast %cst : f32 to vector<1x128xf32>
    %cst_3 = arith.constant 0.000000e+00 : f32
    %3 = vector.broadcast %cst_3 : f32 to vector<1x128xf32>
    %c0_i32 = arith.constant 0 : i32
    %4 = vector.broadcast %c0_i32 : i32 to vector<1x128xi32>
    %5 = arith.cmpi eq, %0, %4 : vector<1x128xi32>
    %c0_4 = arith.constant 0 : index
    %6 = memref.load %arg3[%c0_4] : memref<16xf32, #tpu.memory_space<smem>>
    %cst_5 = arith.constant 0.000000e+00 : f32
    %7 = vector.broadcast %6 : f32 to vector<1x128xf32>
    %8 = vector.broadcast %cst_5 : f32 to vector<1x128xf32>
    %9 = arith.select %5, %7, %8 : vector<1x128xi1>, vector<1x128xf32>
    %10 = arith.addf %2, %9 : vector<1x128xf32>
    %c0_i32_6 = arith.constant 0 : i32
    %11 = vector.broadcast %c0_i32_6 : i32 to vector<1x128xi32>
    %12 = arith.cmpi eq, %1, %11 : vector<1x128xi32>
    %c0_7 = arith.constant 0 : index
    %13 = memref.load %arg4[%c0_7] : memref<16xf32, #tpu.memory_space<smem>>
    %cst_8 = arith.constant 0.000000e+00 : f32
    %14 = vector.broadcast %13 : f32 to vector<1x128xf32>
    %15 = vector.broadcast %cst_8 : f32 to vector<1x128xf32>
    %16 = arith.select %12, %14, %15 : vector<1x128xi1>, vector<1x128xf32>
    %17 = arith.addf %3, %16 : vector<1x128xf32>
    %c1_i32 = arith.constant 1 : i32
    %18 = vector.broadcast %c1_i32 : i32 to vector<1x128xi32>
    %19 = arith.cmpi eq, %0, %18 : vector<1x128xi32>
    %c1 = arith.constant 1 : index
    %20 = memref.load %arg3[%c1] : memref<16xf32, #tpu.memory_space<smem>>
    %cst_9 = arith.constant 0.000000e+00 : f32
    %21 = vector.broadcast %20 : f32 to vector<1x128xf32>
    %22 = vector.broadcast %cst_9 : f32 to vector<1x128xf32>
    %23 = arith.select %19, %21, %22 : vector<1x128xi1>, vector<1x128xf32>
    %24 = arith.addf %10, %23 : vector<1x128xf32>
    %c1_i32_10 = arith.constant 1 : i32
    %25 = vector.broadcast %c1_i32_10 : i32 to vector<1x128xi32>
    %26 = arith.cmpi eq, %1, %25 : vector<1x128xi32>
    %c1_11 = arith.constant 1 : index
    %27 = memref.load %arg4[%c1_11] : memref<16xf32, #tpu.memory_space<smem>>
    %cst_12 = arith.constant 0.000000e+00 : f32
    %28 = vector.broadcast %27 : f32 to vector<1x128xf32>
    %29 = vector.broadcast %cst_12 : f32 to vector<1x128xf32>
    %30 = arith.select %26, %28, %29 : vector<1x128xi1>, vector<1x128xf32>
    %31 = arith.addf %17, %30 : vector<1x128xf32>
    %c2_i32 = arith.constant 2 : i32
    %32 = vector.broadcast %c2_i32 : i32 to vector<1x128xi32>
    %33 = arith.cmpi eq, %0, %32 : vector<1x128xi32>
    %c2 = arith.constant 2 : index
    %34 = memref.load %arg3[%c2] : memref<16xf32, #tpu.memory_space<smem>>
    %cst_13 = arith.constant 0.000000e+00 : f32
    %35 = vector.broadcast %34 : f32 to vector<1x128xf32>
    %36 = vector.broadcast %cst_13 : f32 to vector<1x128xf32>
    %37 = arith.select %33, %35, %36 : vector<1x128xi1>, vector<1x128xf32>
    %38 = arith.addf %24, %37 : vector<1x128xf32>
    %c2_i32_14 = arith.constant 2 : i32
    %39 = vector.broadcast %c2_i32_14 : i32 to vector<1x128xi32>
    %40 = arith.cmpi eq, %1, %39 : vector<1x128xi32>
    %c2_15 = arith.constant 2 : index
    %41 = memref.load %arg4[%c2_15] : memref<16xf32, #tpu.memory_space<smem>>
    %cst_16 = arith.constant 0.000000e+00 : f32
    %42 = vector.broadcast %41 : f32 to vector<1x128xf32>
    %43 = vector.broadcast %cst_16 : f32 to vector<1x128xf32>
    %44 = arith.select %40, %42, %43 : vector<1x128xi1>, vector<1x128xf32>
    %45 = arith.addf %31, %44 : vector<1x128xf32>
    %c3_i32 = arith.constant 3 : i32
    %46 = vector.broadcast %c3_i32 : i32 to vector<1x128xi32>
    %47 = arith.cmpi eq, %0, %46 : vector<1x128xi32>
    %c3 = arith.constant 3 : index
    %48 = memref.load %arg3[%c3] : memref<16xf32, #tpu.memory_space<smem>>
    %cst_17 = arith.constant 0.000000e+00 : f32
    %49 = vector.broadcast %48 : f32 to vector<1x128xf32>
    %50 = vector.broadcast %cst_17 : f32 to vector<1x128xf32>
    %51 = arith.select %47, %49, %50 : vector<1x128xi1>, vector<1x128xf32>
    %52 = arith.addf %38, %51 : vector<1x128xf32>
    %c3_i32_18 = arith.constant 3 : i32
    %53 = vector.broadcast %c3_i32_18 : i32 to vector<1x128xi32>
    %54 = arith.cmpi eq, %1, %53 : vector<1x128xi32>
    %c3_19 = arith.constant 3 : index
    %55 = memref.load %arg4[%c3_19] : memref<16xf32, #tpu.memory_space<smem>>
    %cst_20 = arith.constant 0.000000e+00 : f32
    %56 = vector.broadcast %55 : f32 to vector<1x128xf32>
    %57 = vector.broadcast %cst_20 : f32 to vector<1x128xf32>
    %58 = arith.select %54, %56, %57 : vector<1x128xi1>, vector<1x128xf32>
    %59 = arith.addf %45, %58 : vector<1x128xf32>
    %c4_i32 = arith.constant 4 : i32
    %60 = vector.broadcast %c4_i32 : i32 to vector<1x128xi32>
    %61 = arith.cmpi eq, %0, %60 : vector<1x128xi32>
    %c4 = arith.constant 4 : index
    %62 = memref.load %arg3[%c4] : memref<16xf32, #tpu.memory_space<smem>>
    %cst_21 = arith.constant 0.000000e+00 : f32
    %63 = vector.broadcast %62 : f32 to vector<1x128xf32>
    %64 = vector.broadcast %cst_21 : f32 to vector<1x128xf32>
    %65 = arith.select %61, %63, %64 : vector<1x128xi1>, vector<1x128xf32>
    %66 = arith.addf %52, %65 : vector<1x128xf32>
    %c4_i32_22 = arith.constant 4 : i32
    %67 = vector.broadcast %c4_i32_22 : i32 to vector<1x128xi32>
    %68 = arith.cmpi eq, %1, %67 : vector<1x128xi32>
    %c4_23 = arith.constant 4 : index
    %69 = memref.load %arg4[%c4_23] : memref<16xf32, #tpu.memory_space<smem>>
    %cst_24 = arith.constant 0.000000e+00 : f32
    %70 = vector.broadcast %69 : f32 to vector<1x128xf32>
    %71 = vector.broadcast %cst_24 : f32 to vector<1x128xf32>
    %72 = arith.select %68, %70, %71 : vector<1x128xi1>, vector<1x128xf32>
    %73 = arith.addf %59, %72 : vector<1x128xf32>
    %c5_i32 = arith.constant 5 : i32
    %74 = vector.broadcast %c5_i32 : i32 to vector<1x128xi32>
    %75 = arith.cmpi eq, %0, %74 : vector<1x128xi32>
    %c5 = arith.constant 5 : index
    %76 = memref.load %arg3[%c5] : memref<16xf32, #tpu.memory_space<smem>>
    %cst_25 = arith.constant 0.000000e+00 : f32
    %77 = vector.broadcast %76 : f32 to vector<1x128xf32>
    %78 = vector.broadcast %cst_25 : f32 to vector<1x128xf32>
    %79 = arith.select %75, %77, %78 : vector<1x128xi1>, vector<1x128xf32>
    %80 = arith.addf %66, %79 : vector<1x128xf32>
    %c5_i32_26 = arith.constant 5 : i32
    %81 = vector.broadcast %c5_i32_26 : i32 to vector<1x128xi32>
    %82 = arith.cmpi eq, %1, %81 : vector<1x128xi32>
    %c5_27 = arith.constant 5 : index
    %83 = memref.load %arg4[%c5_27] : memref<16xf32, #tpu.memory_space<smem>>
    %cst_28 = arith.constant 0.000000e+00 : f32
    %84 = vector.broadcast %83 : f32 to vector<1x128xf32>
    %85 = vector.broadcast %cst_28 : f32 to vector<1x128xf32>
    %86 = arith.select %82, %84, %85 : vector<1x128xi1>, vector<1x128xf32>
    %87 = arith.addf %73, %86 : vector<1x128xf32>
    %c6_i32 = arith.constant 6 : i32
    %88 = vector.broadcast %c6_i32 : i32 to vector<1x128xi32>
    %89 = arith.cmpi eq, %0, %88 : vector<1x128xi32>
    %c6 = arith.constant 6 : index
    %90 = memref.load %arg3[%c6] : memref<16xf32, #tpu.memory_space<smem>>
    %cst_29 = arith.constant 0.000000e+00 : f32
    %91 = vector.broadcast %90 : f32 to vector<1x128xf32>
    %92 = vector.broadcast %cst_29 : f32 to vector<1x128xf32>
    %93 = arith.select %89, %91, %92 : vector<1x128xi1>, vector<1x128xf32>
    %94 = arith.addf %80, %93 : vector<1x128xf32>
    %c6_i32_30 = arith.constant 6 : i32
    %95 = vector.broadcast %c6_i32_30 : i32 to vector<1x128xi32>
    %96 = arith.cmpi eq, %1, %95 : vector<1x128xi32>
    %c6_31 = arith.constant 6 : index
    %97 = memref.load %arg4[%c6_31] : memref<16xf32, #tpu.memory_space<smem>>
    %cst_32 = arith.constant 0.000000e+00 : f32
    %98 = vector.broadcast %97 : f32 to vector<1x128xf32>
    %99 = vector.broadcast %cst_32 : f32 to vector<1x128xf32>
    %100 = arith.select %96, %98, %99 : vector<1x128xi1>, vector<1x128xf32>
    %101 = arith.addf %87, %100 : vector<1x128xf32>
    %c7_i32 = arith.constant 7 : i32
    %102 = vector.broadcast %c7_i32 : i32 to vector<1x128xi32>
    %103 = arith.cmpi eq, %0, %102 : vector<1x128xi32>
    %c7 = arith.constant 7 : index
    %104 = memref.load %arg3[%c7] : memref<16xf32, #tpu.memory_space<smem>>
    %cst_33 = arith.constant 0.000000e+00 : f32
    %105 = vector.broadcast %104 : f32 to vector<1x128xf32>
    %106 = vector.broadcast %cst_33 : f32 to vector<1x128xf32>
    %107 = arith.select %103, %105, %106 : vector<1x128xi1>, vector<1x128xf32>
    %108 = arith.addf %94, %107 : vector<1x128xf32>
    %c7_i32_34 = arith.constant 7 : i32
    %109 = vector.broadcast %c7_i32_34 : i32 to vector<1x128xi32>
    %110 = arith.cmpi eq, %1, %109 : vector<1x128xi32>
    %c7_35 = arith.constant 7 : index
    %111 = memref.load %arg4[%c7_35] : memref<16xf32, #tpu.memory_space<smem>>
    %cst_36 = arith.constant 0.000000e+00 : f32
    %112 = vector.broadcast %111 : f32 to vector<1x128xf32>
    %113 = vector.broadcast %cst_36 : f32 to vector<1x128xf32>
    %114 = arith.select %110, %112, %113 : vector<1x128xi1>, vector<1x128xf32>
    %115 = arith.addf %101, %114 : vector<1x128xf32>
    %c8_i32 = arith.constant 8 : i32
    %116 = vector.broadcast %c8_i32 : i32 to vector<1x128xi32>
    %117 = arith.cmpi eq, %0, %116 : vector<1x128xi32>
    %c8 = arith.constant 8 : index
    %118 = memref.load %arg3[%c8] : memref<16xf32, #tpu.memory_space<smem>>
    %cst_37 = arith.constant 0.000000e+00 : f32
    %119 = vector.broadcast %118 : f32 to vector<1x128xf32>
    %120 = vector.broadcast %cst_37 : f32 to vector<1x128xf32>
    %121 = arith.select %117, %119, %120 : vector<1x128xi1>, vector<1x128xf32>
    %122 = arith.addf %108, %121 : vector<1x128xf32>
    %c8_i32_38 = arith.constant 8 : i32
    %123 = vector.broadcast %c8_i32_38 : i32 to vector<1x128xi32>
    %124 = arith.cmpi eq, %1, %123 : vector<1x128xi32>
    %c8_39 = arith.constant 8 : index
    %125 = memref.load %arg4[%c8_39] : memref<16xf32, #tpu.memory_space<smem>>
    %cst_40 = arith.constant 0.000000e+00 : f32
    %126 = vector.broadcast %125 : f32 to vector<1x128xf32>
    %127 = vector.broadcast %cst_40 : f32 to vector<1x128xf32>
    %128 = arith.select %124, %126, %127 : vector<1x128xi1>, vector<1x128xf32>
    %129 = arith.addf %115, %128 : vector<1x128xf32>
    %c9_i32 = arith.constant 9 : i32
    %130 = vector.broadcast %c9_i32 : i32 to vector<1x128xi32>
    %131 = arith.cmpi eq, %0, %130 : vector<1x128xi32>
    %c9 = arith.constant 9 : index
    %132 = memref.load %arg3[%c9] : memref<16xf32, #tpu.memory_space<smem>>
    %cst_41 = arith.constant 0.000000e+00 : f32
    %133 = vector.broadcast %132 : f32 to vector<1x128xf32>
    %134 = vector.broadcast %cst_41 : f32 to vector<1x128xf32>
    %135 = arith.select %131, %133, %134 : vector<1x128xi1>, vector<1x128xf32>
    %136 = arith.addf %122, %135 : vector<1x128xf32>
    %c9_i32_42 = arith.constant 9 : i32
    %137 = vector.broadcast %c9_i32_42 : i32 to vector<1x128xi32>
    %138 = arith.cmpi eq, %1, %137 : vector<1x128xi32>
    %c9_43 = arith.constant 9 : index
    %139 = memref.load %arg4[%c9_43] : memref<16xf32, #tpu.memory_space<smem>>
    %cst_44 = arith.constant 0.000000e+00 : f32
    %140 = vector.broadcast %139 : f32 to vector<1x128xf32>
    %141 = vector.broadcast %cst_44 : f32 to vector<1x128xf32>
    %142 = arith.select %138, %140, %141 : vector<1x128xi1>, vector<1x128xf32>
    %143 = arith.addf %129, %142 : vector<1x128xf32>
    %c10_i32 = arith.constant 10 : i32
    %144 = vector.broadcast %c10_i32 : i32 to vector<1x128xi32>
    %145 = arith.cmpi eq, %0, %144 : vector<1x128xi32>
    %c10 = arith.constant 10 : index
    %146 = memref.load %arg3[%c10] : memref<16xf32, #tpu.memory_space<smem>>
    %cst_45 = arith.constant 0.000000e+00 : f32
    %147 = vector.broadcast %146 : f32 to vector<1x128xf32>
    %148 = vector.broadcast %cst_45 : f32 to vector<1x128xf32>
    %149 = arith.select %145, %147, %148 : vector<1x128xi1>, vector<1x128xf32>
    %150 = arith.addf %136, %149 : vector<1x128xf32>
    %c10_i32_46 = arith.constant 10 : i32
    %151 = vector.broadcast %c10_i32_46 : i32 to vector<1x128xi32>
    %152 = arith.cmpi eq, %1, %151 : vector<1x128xi32>
    %c10_47 = arith.constant 10 : index
    %153 = memref.load %arg4[%c10_47] : memref<16xf32, #tpu.memory_space<smem>>
    %cst_48 = arith.constant 0.000000e+00 : f32
    %154 = vector.broadcast %153 : f32 to vector<1x128xf32>
    %155 = vector.broadcast %cst_48 : f32 to vector<1x128xf32>
    %156 = arith.select %152, %154, %155 : vector<1x128xi1>, vector<1x128xf32>
    %157 = arith.addf %143, %156 : vector<1x128xf32>
    %c11_i32 = arith.constant 11 : i32
    %158 = vector.broadcast %c11_i32 : i32 to vector<1x128xi32>
    %159 = arith.cmpi eq, %0, %158 : vector<1x128xi32>
    %c11 = arith.constant 11 : index
    %160 = memref.load %arg3[%c11] : memref<16xf32, #tpu.memory_space<smem>>
    %cst_49 = arith.constant 0.000000e+00 : f32
    %161 = vector.broadcast %160 : f32 to vector<1x128xf32>
    %162 = vector.broadcast %cst_49 : f32 to vector<1x128xf32>
    %163 = arith.select %159, %161, %162 : vector<1x128xi1>, vector<1x128xf32>
    %164 = arith.addf %150, %163 : vector<1x128xf32>
    %c11_i32_50 = arith.constant 11 : i32
    %165 = vector.broadcast %c11_i32_50 : i32 to vector<1x128xi32>
    %166 = arith.cmpi eq, %1, %165 : vector<1x128xi32>
    %c11_51 = arith.constant 11 : index
    %167 = memref.load %arg4[%c11_51] : memref<16xf32, #tpu.memory_space<smem>>
    %cst_52 = arith.constant 0.000000e+00 : f32
    %168 = vector.broadcast %167 : f32 to vector<1x128xf32>
    %169 = vector.broadcast %cst_52 : f32 to vector<1x128xf32>
    %170 = arith.select %166, %168, %169 : vector<1x128xi1>, vector<1x128xf32>
    %171 = arith.addf %157, %170 : vector<1x128xf32>
    %c12_i32 = arith.constant 12 : i32
    %172 = vector.broadcast %c12_i32 : i32 to vector<1x128xi32>
    %173 = arith.cmpi eq, %0, %172 : vector<1x128xi32>
    %c12 = arith.constant 12 : index
    %174 = memref.load %arg3[%c12] : memref<16xf32, #tpu.memory_space<smem>>
    %cst_53 = arith.constant 0.000000e+00 : f32
    %175 = vector.broadcast %174 : f32 to vector<1x128xf32>
    %176 = vector.broadcast %cst_53 : f32 to vector<1x128xf32>
    %177 = arith.select %173, %175, %176 : vector<1x128xi1>, vector<1x128xf32>
    %178 = arith.addf %164, %177 : vector<1x128xf32>
    %c12_i32_54 = arith.constant 12 : i32
    %179 = vector.broadcast %c12_i32_54 : i32 to vector<1x128xi32>
    %180 = arith.cmpi eq, %1, %179 : vector<1x128xi32>
    %c12_55 = arith.constant 12 : index
    %181 = memref.load %arg4[%c12_55] : memref<16xf32, #tpu.memory_space<smem>>
    %cst_56 = arith.constant 0.000000e+00 : f32
    %182 = vector.broadcast %181 : f32 to vector<1x128xf32>
    %183 = vector.broadcast %cst_56 : f32 to vector<1x128xf32>
    %184 = arith.select %180, %182, %183 : vector<1x128xi1>, vector<1x128xf32>
    %185 = arith.addf %171, %184 : vector<1x128xf32>
    %c13_i32 = arith.constant 13 : i32
    %186 = vector.broadcast %c13_i32 : i32 to vector<1x128xi32>
    %187 = arith.cmpi eq, %0, %186 : vector<1x128xi32>
    %c13 = arith.constant 13 : index
    %188 = memref.load %arg3[%c13] : memref<16xf32, #tpu.memory_space<smem>>
    %cst_57 = arith.constant 0.000000e+00 : f32
    %189 = vector.broadcast %188 : f32 to vector<1x128xf32>
    %190 = vector.broadcast %cst_57 : f32 to vector<1x128xf32>
    %191 = arith.select %187, %189, %190 : vector<1x128xi1>, vector<1x128xf32>
    %192 = arith.addf %178, %191 : vector<1x128xf32>
    %c13_i32_58 = arith.constant 13 : i32
    %193 = vector.broadcast %c13_i32_58 : i32 to vector<1x128xi32>
    %194 = arith.cmpi eq, %1, %193 : vector<1x128xi32>
    %c13_59 = arith.constant 13 : index
    %195 = memref.load %arg4[%c13_59] : memref<16xf32, #tpu.memory_space<smem>>
    %cst_60 = arith.constant 0.000000e+00 : f32
    %196 = vector.broadcast %195 : f32 to vector<1x128xf32>
    %197 = vector.broadcast %cst_60 : f32 to vector<1x128xf32>
    %198 = arith.select %194, %196, %197 : vector<1x128xi1>, vector<1x128xf32>
    %199 = arith.addf %185, %198 : vector<1x128xf32>
    %c14_i32 = arith.constant 14 : i32
    %200 = vector.broadcast %c14_i32 : i32 to vector<1x128xi32>
    %201 = arith.cmpi eq, %0, %200 : vector<1x128xi32>
    %c14 = arith.constant 14 : index
    %202 = memref.load %arg3[%c14] : memref<16xf32, #tpu.memory_space<smem>>
    %cst_61 = arith.constant 0.000000e+00 : f32
    %203 = vector.broadcast %202 : f32 to vector<1x128xf32>
    %204 = vector.broadcast %cst_61 : f32 to vector<1x128xf32>
    %205 = arith.select %201, %203, %204 : vector<1x128xi1>, vector<1x128xf32>
    %206 = arith.addf %192, %205 : vector<1x128xf32>
    %c14_i32_62 = arith.constant 14 : i32
    %207 = vector.broadcast %c14_i32_62 : i32 to vector<1x128xi32>
    %208 = arith.cmpi eq, %1, %207 : vector<1x128xi32>
    %c14_63 = arith.constant 14 : index
    %209 = memref.load %arg4[%c14_63] : memref<16xf32, #tpu.memory_space<smem>>
    %cst_64 = arith.constant 0.000000e+00 : f32
    %210 = vector.broadcast %209 : f32 to vector<1x128xf32>
    %211 = vector.broadcast %cst_64 : f32 to vector<1x128xf32>
    %212 = arith.select %208, %210, %211 : vector<1x128xi1>, vector<1x128xf32>
    %213 = arith.addf %199, %212 : vector<1x128xf32>
    %c15_i32 = arith.constant 15 : i32
    %214 = vector.broadcast %c15_i32 : i32 to vector<1x128xi32>
    %215 = arith.cmpi eq, %0, %214 : vector<1x128xi32>
    %c15 = arith.constant 15 : index
    %216 = memref.load %arg3[%c15] : memref<16xf32, #tpu.memory_space<smem>>
    %cst_65 = arith.constant 0.000000e+00 : f32
    %217 = vector.broadcast %216 : f32 to vector<1x128xf32>
    %218 = vector.broadcast %cst_65 : f32 to vector<1x128xf32>
    %219 = arith.select %215, %217, %218 : vector<1x128xi1>, vector<1x128xf32>
    %220 = arith.addf %206, %219 : vector<1x128xf32>
    %c15_i32_66 = arith.constant 15 : i32
    %221 = vector.broadcast %c15_i32_66 : i32 to vector<1x128xi32>
    %222 = arith.cmpi eq, %1, %221 : vector<1x128xi32>
    %c15_67 = arith.constant 15 : index
    %223 = memref.load %arg4[%c15_67] : memref<16xf32, #tpu.memory_space<smem>>
    %cst_68 = arith.constant 0.000000e+00 : f32
    %224 = vector.broadcast %223 : f32 to vector<1x128xf32>
    %225 = vector.broadcast %cst_68 : f32 to vector<1x128xf32>
    %226 = arith.select %222, %224, %225 : vector<1x128xi1>, vector<1x128xf32>
    %227 = arith.addf %213, %226 : vector<1x128xf32>
    %228 = arith.addf %220, %227 : vector<1x128xf32>
    %cst_69 = arith.constant 0.000000e+00 : f32
    %229 = vector.broadcast %cst_69 : f32 to vector<1x128xf32>
    %230 = arith.subf %229, %228 : vector<1x128xf32>
    %231 = math.exp %230 : vector<1x128xf32>
    %cst_70 = arith.constant 1.000000e+00 : f32
    %232 = vector.broadcast %cst_70 : f32 to vector<1x128xf32>
    %233 = arith.addf %232, %231 : vector<1x128xf32>
    %cst_71 = arith.constant 1.000000e+00 : f32
    %234 = vector.broadcast %cst_71 : f32 to vector<1x128xf32>
    %235 = arith.divf %234, %233 : vector<1x128xf32>
    %cst_72 = arith.constant 9.99999993E-9 : f32
    %cst_73 = arith.constant 1.000000e+00 : f32
    %236 = vector.broadcast %cst_72 : f32 to vector<1x128xf32>
    %237 = arith.maximumf %236, %235 : vector<1x128xf32>
    %238 = vector.broadcast %cst_73 : f32 to vector<1x128xf32>
    %239 = arith.minimumf %238, %237 : vector<1x128xf32>
    %c0_74 = arith.constant 0 : index
    %c0_75 = arith.constant 0 : index
    %240 = vector.load %arg5[%c0_74, %c0_75] : memref<1x128xf32, #tpu.memory_space<vmem>>, vector<1x128xf32>
    tpu.vector_store %arg5[%c0_74, %c0_75], %239 {strides = array<i32>} : memref<1x128xf32, #tpu.memory_space<vmem>>, vector<1x128xf32>,
    return
  }
  func.func @transform_0(%arg0: i32) -> (i32, i32) {
    %c0_i32 = arith.constant 0 : i32
    %c0_i32_0 = arith.constant 0 : i32
    return %arg0, %c0_i32 : i32, i32
  }
  func.func @transform_1(%arg0: i32) -> (i32, i32) {
    %c0_i32 = arith.constant 0 : i32
    %c0_i32_0 = arith.constant 0 : i32
    return %arg0, %c0_i32 : i32, i32
  }
  func.func @transform_2(%arg0: i32) -> i32 {
    %c0_i32 = arith.constant 0 : i32
    %c0_i32_0 = arith.constant 0 : i32
    return %c0_i32 : i32
  }
  func.func @transform_3(%arg0: i32) -> i32 {
    %c0_i32 = arith.constant 0 : i32
    %c0_i32_0 = arith.constant 0 : i32
    return %c0_i32 : i32
  }
  func.func @transform_4(%arg0: i32) -> (i32, i32) {
    %c0_i32 = arith.constant 0 : i32
    %c0_i32_0 = arith.constant 0 : i32
    return %arg0, %c0_i32 : i32, i32
  }
}

</mosaic_0001>

<llo_original>
// kernel: tpu_custom_call.1
$region0: #{tpu_custom_call.1}
  #allocation0 [shape = 'u32[]', space=smem, size = 0x4, offset = 0x4, fixed_abs, tag = 'smem constant byte address 0x4 - core index']
  #allocation1 [shape = 'u32[72,128]{1,0:T(1,128)}', space=vmem, size = 0x9000, scoped, tag = 'internal scratch']
  %s0 = inlined_call_operand.hbm [shape: s32[1,128], index: 0, kind: input, shape index: {}]
  %s1 = inlined_call_operand.hbm [shape: s32[1,128], index: 1, kind: input, shape index: {}]
  %s2 = inlined_call_operand.vmem [shape: f32[16], index: 2, kind: input, shape index: {}]
  %s3 = inlined_call_operand.vmem [shape: f32[16], index: 3, kind: input, shape index: {}]
  %s4 = inlined_call_operand.hbm [shape: f32[1,128], index: 4, kind: output, shape index: {}]
  %s5 = sld [smem:[#allocation0]]
  $region42: #{tpu_custom_call.1} parent=0
    _
  %s7 = ssub.s32 1, %s5
  %s8 = scalar_select 0, %s7, %s5
  $region1: #{tpu_custom_call.1} parent=0
    #allocation2 [shape = 'u8[512]{0}', space=vmem, size = 0x400, scoped, tag = 'input window, operand 0, single buffered']
    #allocation3 [shape = 's32[1]{0}', space=sflag, size = 0x4, scoped, tag = 'scoped memory for tpu_custom_call.1']
    #allocation4 [shape = 's32[1]{0}', space=sflag, size = 0x4, scoped, tag = 'scoped memory for tpu_custom_call.1']
    #allocation5 [shape = 's32[1]{0}', space=sflag, size = 0x4, scoped, tag = 'scoped memory for tpu_custom_call.1']
    #allocation6 [shape = 'u8[512]{0}', space=vmem, size = 0x400, scoped, tag = 'input window, operand 1, single buffered']
    #allocation7 [shape = 's32[1]{0}', space=sflag, size = 0x4, scoped, tag = 'scoped memory for tpu_custom_call.1']
    #allocation8 [shape = 'u8[512]{0}', space=smem, size = 0x200, scoped, tag = 'input window, operand 2, single buffered']
    #allocation9 [shape = 'u8[512]{0}', space=smem, size = 0x200, scoped, tag = 'input window, operand 3, single buffered']
    #allocation10 [shape = 's32[1]{0}', space=sflag, size = 0x4, scoped, tag = 'scoped memory for tpu_custom_call.1']
    #allocation11 [shape = 'u8[512]{0}', space=vmem, size = 0x400, scoped, tag = 'output window, operand 0, single buffered']
    %9 = vsyncpa [#allocation3], 0
    %10 = vsyncpa [#allocation7], 0
    %11 = vsyncpa [#allocation5], 0
    %12 = vsyncpa [#allocation10], 0
    %13 = vsyncpa [#allocation4], 0
    // Predicated region
    $region2: #{tpu_custom_call.1} parent=1 // pred_check
      _
    $region3: #{tpu_custom_call.1} parent=1 // pred_check_branch
      %15 = sbr.rel (0) target = $region5
    $region4: #{tpu_custom_call.1} parent=1 // pred_region
      %17 = vsyncadd [#allocation3], 0
      %s19 = sshll.u32 %s0, 4
      %s20 = int_to_ptr.hbm [resolvable:$true] %s19
      %s21 = sshll.u32 [#allocation2], 4
      %s22 = int_to_ptr.vmem [resolvable:$true] %s21
      %24 = dma.hbm_to_vmem [thread:$0]  %s20, 16, %s22, [#allocation3]
    $region5: #{tpu_custom_call.1} parent=1 // pred_fallthru
      _
    // Predicated region
    $region6: #{tpu_custom_call.1} parent=1 // pred_check
      _
    $region7: #{tpu_custom_call.1} parent=1 // pred_check_branch
      %26 = sbr.rel (0) target = $region9
    $region8: #{tpu_custom_call.1} parent=1 // pred_region
      %28 = vsyncadd [#allocation7], 0
      %s30 = sshll.u32 %s1, 4
      %s31 = int_to_ptr.hbm [resolvable:$true] %s30
      %s32 = sshll.u32 [#allocation6], 4
      %s33 = int_to_ptr.vmem [resolvable:$true] %s32
      %35 = dma.hbm_to_vmem [thread:$0]  %s31, 16, %s33, [#allocation7]
    $region9: #{tpu_custom_call.1} parent=1 // pred_fallthru
      _
    // Predicated region
    $region10: #{tpu_custom_call.1} parent=1 // pred_check
      _
    $region11: #{tpu_custom_call.1} parent=1 // pred_check_branch
      %37 = sbr.rel (0) target = $region13
    $region12: #{tpu_custom_call.1} parent=1 // pred_region
      %39 = vsyncadd [#allocation5], 0
      %s41 = sshll.u32 %s2, 4
      %s42 = int_to_ptr.vmem [resolvable:$true] %s41
      %44 = dma.vmem_to_smem %s42, 16, [#allocation8], [#allocation5]
    $region13: #{tpu_custom_call.1} parent=1 // pred_fallthru
      _
    // Predicated region
    $region14: #{tpu_custom_call.1} parent=1 // pred_check
      _
    $region15: #{tpu_custom_call.1} parent=1 // pred_check_branch
      %46 = sbr.rel (0) target = $region17
    $region16: #{tpu_custom_call.1} parent=1 // pred_region
      %48 = vsyncadd [#allocation10], 0
      %s50 = sshll.u32 %s3, 4
      %s51 = int_to_ptr.vmem [resolvable:$true] %s50
      %53 = dma.vmem_to_smem %s51, 16, [#allocation9], [#allocation10]
    $region17: #{tpu_custom_call.1} parent=1 // pred_fallthru
      _
    // Predicated region
    $region18: #{tpu_custom_call.1} parent=1 // pred_check
      _
    $region19: #{tpu_custom_call.1} parent=1 // pred_check_branch
      %55 = sbr.rel (0) target = $region21
    $region20: #{tpu_custom_call.1} parent=1 // pred_region
      %57 = dma.done [#allocation3], 16
    $region21: #{tpu_custom_call.1} parent=1 // pred_fallthru
      _
    // Predicated region
    $region22: #{tpu_custom_call.1} parent=1 // pred_check
      _
    $region23: #{tpu_custom_call.1} parent=1 // pred_check_branch
      %59 = sbr.rel (0) target = $region25
    $region24: #{tpu_custom_call.1} parent=1 // pred_region
      %61 = dma.done [#allocation7], 16
    $region25: #{tpu_custom_call.1} parent=1 // pred_fallthru
      _
    // Predicated region
    $region26: #{tpu_custom_call.1} parent=1 // pred_check
      _
    $region27: #{tpu_custom_call.1} parent=1 // pred_check_branch
      %63 = sbr.rel (0) target = $region29
    $region28: #{tpu_custom_call.1} parent=1 // pred_region
      %65 = dma.done [#allocation5], 16
    $region29: #{tpu_custom_call.1} parent=1 // pred_fallthru
      _
    // Predicated region
    $region30: #{tpu_custom_call.1} parent=1 // pred_check
      _
    $region31: #{tpu_custom_call.1} parent=1 // pred_check_branch
      %67 = sbr.rel (0) target = $region33
    $region32: #{tpu_custom_call.1} parent=1 // pred_region
      %69 = dma.done [#allocation10], 16
    $region33: #{tpu_custom_call.1} parent=1 // pred_fallthru
      _
    %70 = sfence
    %v71 = vld [vmem:[#allocation2] sm:$0x1]
    %v72 = vld [vmem:[#allocation6] sm:$0x1]
    %vm73 = vcmp.eq.s32.totalorder %v71, 0
    %s74 = sld [smem:[#allocation8]]
    %v75 = vstv %s74
    %v76 = vsel %vm73, %v75, 0.0
    %v77 = vadd.f32 %v76, 0.0
    %vm78 = vcmp.eq.s32.totalorder %v72, 0
    %s79 = sld [smem:[#allocation9]]
    %v80 = vstv %s79
    %v81 = vsel %vm78, %v80, 0.0
    %v82 = vadd.f32 %v81, 0.0
    %vm83 = vcmp.eq.s32.totalorder %v71, 1
    %s84 = sld [smem:[#allocation8 + $0x1]]
    %v85 = vstv %s84
    %v86 = vsel %vm83, %v85, 0.0
    %v87 = vadd.f32 %v77, %v86
    %vm88 = vcmp.eq.s32.totalorder %v72, 1
    %s89 = sld [smem:[#allocation9 + $0x1]]
    %v90 = vstv %s89
    %v91 = vsel %vm88, %v90, 0.0
    %v92 = vadd.f32 %v82, %v91
    %vm93 = vcmp.eq.s32.totalorder %v71, 2
    %s94 = sld [smem:[#allocation8 + $0x2]]
    %v95 = vstv %s94
    %v96 = vsel %vm93, %v95, 0.0
    %v97 = vadd.f32 %v87, %v96
    %vm98 = vcmp.eq.s32.totalorder %v72, 2
    %s99 = sld [smem:[#allocation9 + $0x2]]
    %v100 = vstv %s99
    %v101 = vsel %vm98, %v100, 0.0
    %v102 = vadd.f32 %v92, %v101
    %vm103 = vcmp.eq.s32.totalorder %v71, 3
    %s104 = sld [smem:[#allocation8 + $0x3]]
    %v105 = vstv %s104
    %v106 = vsel %vm103, %v105, 0.0
    %v107 = vadd.f32 %v97, %v106
    %vm108 = vcmp.eq.s32.totalorder %v72, 3
    %s109 = sld [smem:[#allocation9 + $0x3]]
    %v110 = vstv %s109
    %v111 = vsel %vm108, %v110, 0.0
    %v112 = vadd.f32 %v102, %v111
    %vm113 = vcmp.eq.s32.totalorder %v71, 4
    %s114 = sld [smem:[#allocation8 + $0x4]]
    %v115 = vstv %s114
    %v116 = vsel %vm113, %v115, 0.0
    %v117 = vadd.f32 %v107, %v116
    %vm118 = vcmp.eq.s32.totalorder %v72, 4
    %s119 = sld [smem:[#allocation9 + $0x4]]
    %v120 = vstv %s119
    %v121 = vsel %vm118, %v120, 0.0
    %v122 = vadd.f32 %v112, %v121
    %vm123 = vcmp.eq.s32.totalorder %v71, 5
    %s124 = sld [smem:[#allocation8 + $0x5]]
    %v125 = vstv %s124
    %v126 = vsel %vm123, %v125, 0.0
    %v127 = vadd.f32 %v117, %v126
    %vm128 = vcmp.eq.s32.totalorder %v72, 5
    %s129 = sld [smem:[#allocation9 + $0x5]]
    %v130 = vstv %s129
    %v131 = vsel %vm128, %v130, 0.0
    %v132 = vadd.f32 %v122, %v131
    %vm133 = vcmp.eq.s32.totalorder %v71, 6
    %s134 = sld [smem:[#allocation8 + $0x6]]
    %v135 = vstv %s134
    %v136 = vsel %vm133, %v135, 0.0
    %v137 = vadd.f32 %v127, %v136
    %vm138 = vcmp.eq.s32.totalorder %v72, 6
    %s139 = sld [smem:[#allocation9 + $0x6]]
    %v140 = vstv %s139
    %v141 = vsel %vm138, %v140, 0.0
    %v142 = vadd.f32 %v132, %v141
    %vm143 = vcmp.eq.s32.totalorder %v71, 7
    %s144 = sld [smem:[#allocation8 + $0x7]]
    %v145 = vstv %s144
    %v146 = vsel %vm143, %v145, 0.0
    %v147 = vadd.f32 %v137, %v146
    %vm148 = vcmp.eq.s32.totalorder %v72, 7
    %s149 = sld [smem:[#allocation9 + $0x7]]
    %v150 = vstv %s149
    %v151 = vsel %vm148, %v150, 0.0
    %v152 = vadd.f32 %v142, %v151
    %vm153 = vcmp.eq.s32.totalorder %v71, 8
    %s154 = sld [smem:[#allocation8 + $0x8]]
    %v155 = vstv %s154
    %v156 = vsel %vm153, %v155, 0.0
    %v157 = vadd.f32 %v147, %v156
    %vm158 = vcmp.eq.s32.totalorder %v72, 8
    %s159 = sld [smem:[#allocation9 + $0x8]]
    %v160 = vstv %s159
    %v161 = vsel %vm158, %v160, 0.0
    %v162 = vadd.f32 %v152, %v161
    %vm163 = vcmp.eq.s32.totalorder %v71, 9
    %s164 = sld [smem:[#allocation8 + $0x9]]
    %v165 = vstv %s164
    %v166 = vsel %vm163, %v165, 0.0
    %v167 = vadd.f32 %v157, %v166
    %vm168 = vcmp.eq.s32.totalorder %v72, 9
    %s169 = sld [smem:[#allocation9 + $0x9]]
    %v170 = vstv %s169
    %v171 = vsel %vm168, %v170, 0.0
    %v172 = vadd.f32 %v162, %v171
    %vm173 = vcmp.eq.s32.totalorder %v71, 10
    %s174 = sld [smem:[#allocation8 + $0xa]]
    %v175 = vstv %s174
    %v176 = vsel %vm173, %v175, 0.0
    %v177 = vadd.f32 %v167, %v176
    %vm178 = vcmp.eq.s32.totalorder %v72, 10
    %s179 = sld [smem:[#allocation9 + $0xa]]
    %v180 = vstv %s179
    %v181 = vsel %vm178, %v180, 0.0
    %v182 = vadd.f32 %v172, %v181
    %vm183 = vcmp.eq.s32.totalorder %v71, 11
    %s184 = sld [smem:[#allocation8 + $0xb]]
    %v185 = vstv %s184
    %v186 = vsel %vm183, %v185, 0.0
    %v187 = vadd.f32 %v177, %v186
    %vm188 = vcmp.eq.s32.totalorder %v72, 11
    %s189 = sld [smem:[#allocation9 + $0xb]]
    %v190 = vstv %s189
    %v191 = vsel %vm188, %v190, 0.0
    %v192 = vadd.f32 %v182, %v191
    %vm193 = vcmp.eq.s32.totalorder %v71, 12
    %s194 = sld [smem:[#allocation8 + $0xc]]
    %v195 = vstv %s194
    %v196 = vsel %vm193, %v195, 0.0
    %v197 = vadd.f32 %v187, %v196
    %vm198 = vcmp.eq.s32.totalorder %v72, 12
    %s199 = sld [smem:[#allocation9 + $0xc]]
    %v200 = vstv %s199
    %v201 = vsel %vm198, %v200, 0.0
    %v202 = vadd.f32 %v192, %v201
    %vm203 = vcmp.eq.s32.totalorder %v71, 13
    %s204 = sld [smem:[#allocation8 + $0xd]]
    %v205 = vstv %s204
    %v206 = vsel %vm203, %v205, 0.0
    %v207 = vadd.f32 %v197, %v206
    %vm208 = vcmp.eq.s32.totalorder %v72, 13
    %s209 = sld [smem:[#allocation9 + $0xd]]
    %v210 = vstv %s209
    %v211 = vsel %vm208, %v210, 0.0
    %v212 = vadd.f32 %v202, %v211
    %vm213 = vcmp.eq.s32.totalorder %v71, 14
    %s214 = sld [smem:[#allocation8 + $0xe]]
    %v215 = vstv %s214
    %v216 = vsel %vm213, %v215, 0.0
    %v217 = vadd.f32 %v207, %v216
    %vm218 = vcmp.eq.s32.totalorder %v72, 14
    %s219 = sld [smem:[#allocation9 + $0xe]]
    %v220 = vstv %s219
    %v221 = vsel %vm218, %v220, 0.0
    %v222 = vadd.f32 %v212, %v221
    %vm223 = vcmp.eq.s32.totalorder %v71, 15
    %s224 = sld [smem:[#allocation8 + $0xf]]
    %v225 = vstv %s224
    %v226 = vsel %vm223, %v225, 0.0
    %v227 = vadd.f32 %v217, %v226
    %vm228 = vcmp.eq.s32.totalorder %v72, 15
    %s229 = sld [smem:[#allocation9 + $0xf]]
    %v230 = vstv %s229
    %v231 = vsel %vm228, %v230, 0.0
    %v232 = vadd.f32 %v222, %v231
    %v233 = vadd.f32 %v227, %v232
    %v234 = vsub.f32 0.0, %v233
    %v235 = vmul.f32 %v234, 1.442695
    %v236 = vpow.pop %v235
    %v237 = vadd.f32 %v236, 1.0
    %v238 = vrcp.pop %v237
    %v239 = vmul.f32 %v237, %v238
    %v240 = vsub.f32 1.0, %v239
    %v241 = vmul.f32 %v238, %v240
    %v242 = vadd.f32 %v238, %v241
    %vm243 = vweird.f32 %v237
    %vm244 = vweird.f32 %v238
    %vm245 = vmor %vm243, %vm244
    %v246 = vsel %vm245, %v238, %v242
    %v247 = vand.u32 2147483647, %v237
    %vm248 = vcmp.eq.f32.partialorder %v247, 8.507059e+37
    %v249 = vand.u32 %v237, 2147483648
    %v250 = vor.u32 1.1754944e-38, %v249
    %v251 = vsel %vm248, %v250, %v246
    %v252 = vmul.f32 1.0, %v251
    %v253 = vmax.f32 %v252, 1e-08
    %v254 = vmin.f32 %v253, 1.0
    %255 = vst [vmem:[#allocation11] sm:$0x1] %v254
    // Predicated region
    $region34: #{tpu_custom_call.1} parent=1 // pred_check
      _
    $region35: #{tpu_custom_call.1} parent=1 // pred_check_branch
      %257 = sbr.rel (0) target = $region37
    $region36: #{tpu_custom_call.1} parent=1 // pred_region
      %259 = vsyncadd [#allocation4], 0
      %s261 = sshll.u32 [#allocation11], 4
      %s262 = int_to_ptr.vmem [resolvable:$true] %s261
      %s263 = sshll.u32 %s4, 4
      %s264 = int_to_ptr.hbm [resolvable:$true] %s263
      %266 = dma.vmem_to_hbm [thread:$0]  %s262, 16, %s264, [#allocation4]
    $region37: #{tpu_custom_call.1} parent=1 // pred_fallthru
      _
    // Predicated region
    $region38: #{tpu_custom_call.1} parent=1 // pred_check
      _
    $region39: #{tpu_custom_call.1} parent=1 // pred_check_branch
      %268 = sbr.rel (0) target = $region41
    $region40: #{tpu_custom_call.1} parent=1 // pred_region
      %270 = dma.done [#allocation4], 16
    $region41: #{tpu_custom_call.1} parent=1 // pred_fallthru
      _
    %271 = vsyncpa [#allocation3], 1
    %272 = vsyncpa [#allocation7], 1
    %273 = vsyncpa [#allocation4], 1
    %274 = vsyncpa [#allocation5], 1
    %275 = vsyncpa [#allocation10], 1

</llo_original>
